<compile_context>
chip_gen: v7x
topology: tpu7x:2x2x1
jax: 0.10.0
libtpu: 0.0.40
codegen_flags: <defaults>
</compile_context>

<pallas_src>
import math
import functools

import jax
import jax.numpy as jnp
from jax.experimental import pallas as pl
from jax.experimental.pallas import tpu as pltpu


def _round_up(x, m):
    return (x + m - 1) // m * m


def _pick_tile(dim, cap, candidates=(1024, 512, 256, 128)):
    """Tile for an N/K axis: whole axis if small, else a 128-multiple divisor."""
    if dim <= cap:
        return dim
    for c in candidates:
        if c <= cap and dim % c == 0:
            return c
    return dim  # fallback: keep the whole axis resident


def _linear_bias_kernel(x_ref, w_ref, b_ref, o_ref, acc_ref):
    # x_ref: (tm, tk)  w_ref: (tk, tn)  b_ref: (1, tn)  o_ref: (tm, tn)
    k = pl.program_id(2)

    @pl.when(k == 0)
    def _():
        acc_ref[...] = jnp.zeros_like(acc_ref)

    acc_ref[...] += jnp.dot(x_ref[...], w_ref[...],
                            preferred_element_type=jnp.float32)

    @pl.when(k == pl.num_programs(2) - 1)
    def _():
        o_ref[...] = (acc_ref[...] + b_ref[...]).astype(o_ref.dtype)


def _linear_nobias_kernel(x_ref, w_ref, o_ref, acc_ref):
    k = pl.program_id(2)

    @pl.when(k == 0)
    def _():
        acc_ref[...] = jnp.zeros_like(acc_ref)

    acc_ref[...] += jnp.dot(x_ref[...], w_ref[...],
                            preferred_element_type=jnp.float32)

    @pl.when(k == pl.num_programs(2) - 1)
    def _():
        o_ref[...] = acc_ref[...].astype(o_ref.dtype)


@functools.partial(jax.jit,
                   static_argnames=("tile_m", "tile_n_cap", "tile_k_cap"))
def pallas_linear(features, weight, bias=None, *, tile_m=256,
                  tile_n_cap=1024, tile_k_cap=1024):
    """F.linear on the feature matrix: (N, Cin) @ (Cout, Cin).T + (Cout,)."""
    n, cin = features.shape
    cout, cin_w = weight.shape
    assert cin == cin_w

    # Sublane multiple for the row tile: 8 for f32, 16 for bf16, 32 for int8.
    sublane = max(8, 32 // jnp.dtype(features.dtype).itemsize)

    # Shrink the M tile for tiny inputs; keep it sublane-aligned.
    tm = _round_up(min(tile_m, _round_up(n, sublane)), sublane)

    # Lane-dense output: pad Cout (weight columns + bias) up to 128 multiple.
    cout_pad = _round_up(cout, 128)

    # One-time transpose (and pad) of the weight -> (Cin, Cout_pad) RHS.
    w_t = weight.T
    if cout_pad != cout:
        w_t = jnp.pad(w_t, ((0, 0), (0, cout_pad - cout)))

    tn = _pick_tile(cout_pad, tile_n_cap)   # always a 128-multiple
    tk = _pick_tile(cin, tile_k_cap)        # divides cin (or equals it)

    grid = (pl.cdiv(n, tm), cout_pad // tn, cin // tk)

    x_spec = pl.BlockSpec((tm, tk), lambda i, j, k: (i, k))
    w_spec = pl.BlockSpec((tk, tn), lambda i, j, k: (k, j))
    o_spec = pl.BlockSpec((tm, tn), lambda i, j, k: (i, j))
    scratch = [pltpu.VMEM((tm, tn), jnp.float32)]

    cparams = pltpu.CompilerParams(
        dimension_semantics=("parallel", "parallel", "arbitrary"),
        vmem_limit_bytes=48 * 1024 * 1024,  # safe on v5e/v6e/v7x
    )

    if bias is not None:
        b2d = bias.astype(jnp.float32).reshape(1, cout)
        if cout_pad != cout:
            b2d = jnp.pad(b2d, ((0, 0), (0, cout_pad - cout)))
        b_spec = pl.BlockSpec((1, tn), lambda i, j, k: (0, j))
        out = pl.pallas_call(
            _linear_bias_kernel,
            out_shape=jax.ShapeDtypeStruct((n, cout_pad), features.dtype),
            grid_spec=pltpu.PrefetchScalarGridSpec(
                num_scalar_prefetch=0, grid=grid,
                in_specs=[x_spec, w_spec, b_spec],
                out_specs=o_spec, scratch_shapes=scratch),
            compiler_params=cparams,
        )(features, w_t, b2d)
    else:
        out = pl.pallas_call(
            _linear_nobias_kernel,
            out_shape=jax.ShapeDtypeStruct((n, cout_pad), features.dtype),
            grid_spec=pltpu.PrefetchScalarGridSpec(
                num_scalar_prefetch=0, grid=grid,
                in_specs=[x_spec, w_spec],
                out_specs=o_spec, scratch_shapes=scratch),
            compiler_params=cparams,
        )(features, w_t)

    if cout_pad != cout:
        out = out[:, :cout]
    return out


class SparseLinear:
    """JAX mirror of sparseconvnet.Linear (forward only)."""

    def __init__(self, dimension, in_nPlanes, out_nPlanes, bias=True, *, key):
        self.dimension = dimension
        self.in_nPlanes = in_nPlanes
        self.out_nPlanes = out_nPlanes
        stdv = 1.0 / math.sqrt(in_nPlanes)
        kw, kb = jax.random.split(key)
        # reset_parameters(): uniform(-stdv, stdv)
        self.weight = jax.random.uniform(
            kw, (out_nPlanes, in_nPlanes), jnp.float32, -stdv, stdv)
        self.bias = (jax.random.uniform(kb, (out_nPlanes,), jnp.float32,
                                        -stdv, stdv) if bias else None)

    def __call__(self, features, metadata=None, spatial_size=None):
        # metadata / spatial_size pass through unchanged, as in PyTorch.
        out_features = pallas_linear(features, self.weight, self.bias)
        return dict(features=out_features, metadata=metadata,
                    spatial_size=spatial_size)


if __name__ == "__main__":
    key = jax.random.PRNGKey(0)
    k_feat, k_params = jax.random.split(key)

    # Small shapes: 40 active sites, 32 input planes, 48 output planes,
    # dimension=2 spatial metadata (passed through).
    n_active, cin, cout = 40, 32, 48
    features = jax.random.normal(k_feat, (n_active, cin), jnp.float32)

    layer = SparseLinear(dimension=2, in_nPlanes=cin, out_nPlanes=cout,
                         bias=True, key=k_params)
    out = layer(features, metadata=None, spatial_size=(16, 16))
    y = jax.block_until_ready(out["features"])

    # Reference check against plain JAX F.linear
    ref = features @ layer.weight.T + layer.bias
    assert y.shape == (n_active, cout)
    assert jnp.allclose(y, ref, atol=1e-5, rtol=1e-5)

    # Also exercise the no-bias path once.
    layer_nb = SparseLinear(dimension=2, in_nPlanes=cin, out_nPlanes=cout,
                            bias=False, key=k_params)
    y_nb = jax.block_until_ready(layer_nb(features)["features"])
    assert jnp.allclose(y_nb, features @ layer_nb.weight.T, atol=1e-5, rtol=1e-5)

    print("KERNEL_OK")
</pallas_src>

<mosaic_0001>
module attributes {stable_mosaic.version = 11 : i64} {
  func.func @_linear_bias_kernel(%arg0: i32, %arg1: i32, %arg2: i32, %arg3: memref<40x32xf32, #tpu.memory_space<vmem>>, %arg4: memref<32x128xf32, #tpu.memory_space<vmem>>, %arg5: memref<1x128xf32, #tpu.memory_space<vmem>>, %arg6: memref<40x128xf32, #tpu.memory_space<vmem>>, %arg7: memref<40x128xf32, #tpu.memory_space<vmem>>) attributes {dimension_semantics = [#tpu.dimension_semantics<parallel>, #tpu.dimension_semantics<parallel>, #tpu.dimension_semantics<arbitrary>], iteration_bounds = array<i64: 1, 1, 1>, scalar_prefetch = 0 : i64, scratch_operands = 1 : i64, tpu.core_type = #tpu.core_type<tc>, window_params = [{transform_indices = @transform_0, window_bounds = array<i64: 40, 32>}, {transform_indices = @transform_1, window_bounds = array<i64: 32, 128>}, {transform_indices = @transform_2, window_bounds = array<i64: 1, 128>}, {transform_indices = @transform_3, window_bounds = array<i64: 40, 128>}]} {
    %c0_i32 = arith.constant 0 : i32
    %0 = arith.cmpi eq, %arg2, %c0_i32 : i32
    %1 = arith.extui %0 : i1 to i32
    %c0_i32_0 = arith.constant 0 : i32
    %2 = arith.cmpi ne, %1, %c0_i32_0 : i32
    scf.if %2 {
      %cst_10 = arith.constant 0.000000e+00 : f32
      %12 = vector.broadcast %cst_10 : f32 to vector<40x128xf32>
      %c0_11 = arith.constant 0 : index
      %c0_12 = arith.constant 0 : index
      %13 = vector.load %arg7[%c0_11, %c0_12] : memref<40x128xf32, #tpu.memory_space<vmem>>, vector<40x128xf32>
      tpu.vector_store %arg7[%c0_11, %c0_12], %12 {strides = array<i32>} : memref<40x128xf32, #tpu.memory_space<vmem>>, vector<40x128xf32>,
    } else {
    }
    %c0 = arith.constant 0 : index
    %c0_1 = arith.constant 0 : index
    %3 = vector.load %arg7[%c0, %c0_1] : memref<40x128xf32, #tpu.memory_space<vmem>>, vector<40x128xf32>
    %c0_2 = arith.constant 0 : index
    %c0_3 = arith.constant 0 : index
    %4 = vector.load %arg3[%c0_2, %c0_3] : memref<40x32xf32, #tpu.memory_space<vmem>>, vector<40x32xf32>
    %c0_4 = arith.constant 0 : index
    %c0_5 = arith.constant 0 : index
    %5 = vector.load %arg4[%c0_4, %c0_5] : memref<32x128xf32, #tpu.memory_space<vmem>>, vector<32x128xf32>
    %cst = arith.constant dense<0.000000e+00> : vector<40x128xf32>
    %6 = tpu.matmul %4, %5, %cst {dimension_numbers = #tpu.dot_dimension_numbers<[1], [0], [0], [1], [0, 0, 1, 1], [], []>} : vector<40x32xf32>, vector<32x128xf32>, vector<40x128xf32> -> vector<40x128xf32>
    %7 = arith.addf %3, %6 : vector<40x128xf32>
    %c0_6 = arith.constant 0 : index
    %c0_7 = arith.constant 0 : index
    %8 = vector.load %arg7[%c0_6, %c0_7] : memref<40x128xf32, #tpu.memory_space<vmem>>, vector<40x128xf32>
    tpu.vector_store %arg7[%c0_6, %c0_7], %7 {strides = array<i32>} : memref<40x128xf32, #tpu.memory_space<vmem>>, vector<40x128xf32>,
    %c0_i32_8 = arith.constant 0 : i32
    %9 = arith.cmpi eq, %arg2, %c0_i32_8 : i32
    %10 = arith.extui %9 : i1 to i32
    %c0_i32_9 = arith.constant 0 : i32
    %11 = arith.cmpi ne, %10, %c0_i32_9 : i32
    scf.if %11 {
      %c0_10 = arith.constant 0 : index
      %c0_11 = arith.constant 0 : index
      %12 = vector.load %arg7[%c0_10, %c0_11] : memref<40x128xf32, #tpu.memory_space<vmem>>, vector<40x128xf32>
      %c0_12 = arith.constant 0 : index
      %c0_13 = arith.constant 0 : index
      %13 = vector.load %arg5[%c0_12, %c0_13] : memref<1x128xf32, #tpu.memory_space<vmem>>, vector<1x128xf32>
      %14 = vector.broadcast %13 : vector<1x128xf32> to vector<40x128xf32>
      %15 = arith.addf %12, %14 : vector<40x128xf32>
      %c0_14 = arith.constant 0 : index
      %c0_15 = arith.constant 0 : index
      %16 = vector.load %arg6[%c0_14, %c0_15] : memref<40x128xf32, #tpu.memory_space<vmem>>, vector<40x128xf32>
      tpu.vector_store %arg6[%c0_14, %c0_15], %15 {strides = array<i32>} : memref<40x128xf32, #tpu.memory_space<vmem>>, vector<40x128xf32>,
    } else {
    }
    return
  }
  func.func @transform_0(%arg0: i32, %arg1: i32, %arg2: i32) -> (i32, i32) {
    %c0_i32 = arith.constant 0 : i32
    return %arg0, %arg2 : i32, i32
  }
  func.func @transform_1(%arg0: i32, %arg1: i32, %arg2: i32) -> (i32, i32) {
    %c0_i32 = arith.constant 0 : i32
    return %arg2, %arg1 : i32, i32
  }
  func.func @transform_2(%arg0: i32, %arg1: i32, %arg2: i32) -> (i32, i32) {
    %c0_i32 = arith.constant 0 : i32
    %c0_i32_0 = arith.constant 0 : i32
    return %c0_i32, %arg1 : i32, i32
  }
  func.func @transform_3(%arg0: i32, %arg1: i32, %arg2: i32) -> (i32, i32) {
    %c0_i32 = arith.constant 0 : i32
    return %arg0, %arg1 : i32, i32
  }
}

</mosaic_0001>

<llo_original>
// kernel: pallas_linear.1
$region0: #{pallas_linear.1}
  #allocation0 [shape = 'u32[]', space=smem, size = 0x4, offset = 0x4, fixed_abs, tag = 'smem constant byte address 0x4 - core index']
  #allocation1 [shape = 'u32[144,128]{1,0:T(1,128)}', space=vmem, size = 0x12000, scoped, tag = 'internal scratch']
  #allocation2 [shape = 'f32[40,128]{1,0:T(8,128)}', space=vmem, size = 0x5000, scoped, tag = 'scratch operand']
  %s0 = inlined_call_operand.vmem [shape: f32[40,32], index: 0, kind: input, shape index: {}]
  %s1 = inlined_call_operand.vmem [shape: f32[32,128], index: 1, kind: input, shape index: {}]
  %s2 = inlined_call_operand.vmem [shape: f32[1,128], index: 2, kind: input, shape index: {}]
  %s3 = inlined_call_operand.hbm [shape: f32[40,128], index: 3, kind: output, shape index: {}]
  %s4 = sld [smem:[#allocation0]]
  $region30: #{pallas_linear.1} parent=0
    _
  %s6 = ssub.s32 1, %s4
  %s7 = scalar_select 0, %s6, %s4
  $region1: #{pallas_linear.1} parent=0
    #allocation3 [shape = 'u8[20480]{0}', space=vmem, size = 0x5000, scoped, tag = 'output window, operand 0, single buffered']
    #allocation4 [shape = 's32[1]{0}', space=sflag, size = 0x4, scoped, tag = 'scoped memory for pallas_linear.1']
    %8 = vsyncpa [#allocation4], 0
    // Predicated region
    $region2: #{pallas_linear.1} parent=1 // pred_check
      _
    $region3: #{pallas_linear.1} parent=1 // pred_check_branch
      %10 = sbr.rel (0) target = $region5
    $region4: #{pallas_linear.1} parent=1 // pred_region
      _
    $region5: #{pallas_linear.1} parent=1 // pred_fallthru
      _
    // Predicated region
    $region6: #{pallas_linear.1} parent=1 // pred_check
      _
    $region7: #{pallas_linear.1} parent=1 // pred_check_branch
      %12 = sbr.rel (0) target = $region9
    $region8: #{pallas_linear.1} parent=1 // pred_region
      _
    $region9: #{pallas_linear.1} parent=1 // pred_fallthru
      _
    // Predicated region
    $region10: #{pallas_linear.1} parent=1 // pred_check
      _
    $region11: #{pallas_linear.1} parent=1 // pred_check_branch
      %14 = sbr.rel (0) target = $region13
    $region12: #{pallas_linear.1} parent=1 // pred_region
      _
    $region13: #{pallas_linear.1} parent=1 // pred_fallthru
      _
    %p15 = scmp.eq.s32.totalorder 0, 0
    // Predicated region
    $region14: #{pallas_linear.1} parent=1 // pred_check
      %p16 = pneg %p15
    $region15: #{pallas_linear.1} parent=1 // pred_check_branch
      %18 = sbr.rel (%p16) target = $region17
    $region16: #{pallas_linear.1} parent=1 // pred_region
      %19 = vst [vmem:[#allocation2] sm:$0xff] 0.0
      %20 = vst [vmem:[#allocation2 + $0x8] sm:$0xff] 0.0
      %21 = vst [vmem:[#allocation2 + $0x10] sm:$0xff] 0.0
      %22 = vst [vmem:[#allocation2 + $0x18] sm:$0xff] 0.0
      %23 = vst [vmem:[#allocation2 + $0x20] sm:$0xff] 0.0
    $region17: #{pallas_linear.1} parent=1 // pred_fallthru
      _
    %v24 = vld [vmem:[#allocation2] sm:$0xff]
    %v25 = vld [vmem:[#allocation2 + $0x8] sm:$0xff]
    %v26 = vld [vmem:[#allocation2 + $0x10] sm:$0xff]
    %v27 = vld [vmem:[#allocation2 + $0x18] sm:$0xff]
    %v28 = vld [vmem:[#allocation2 + $0x20] sm:$0xff]
    %v29 = vld [vmem:[%s0] sm:$0xff]
    %v30 = vld [vmem:[%s0 + $0x8] sm:$0xff]
    %v31 = vld [vmem:[%s0 + $0x10] sm:$0xff]
    %v32 = vld [vmem:[%s0 + $0x18] sm:$0xff]
    %v33 = vld [vmem:[%s0 + $0x20] sm:$0xff]
    %v34 = vld [vmem:[%s1] sm:$0xff]
    %v35 = vld [vmem:[%s1 + $0x8] sm:$0xff]
    %v36 = vld [vmem:[%s1 + $0x10] sm:$0xff]
    %v37 = vld [vmem:[%s1 + $0x18] sm:$0xff]
    %vm38 = vcmask 261120
    %v40 = vsel %vm38, %v29, 0
    %v43 = vsel %vm38, %v30, 0
    %v46 = vsel %vm38, %v31, 0
    %v49 = vsel %vm38, %v32, 0
    %v52 = vsel %vm38, %v33, 0
    %54 = vmatprep.subr.mxu0 0.0
    %55 = vmatpush1.msra.mxu0 %v34
    %56 = vmatprep.subr.mxu0 0.0
    %57 = vmatpush1.msra.mxu0 %v35
    %58 = vmatprep.subr.mxu0 0.0
    %59 = vmatpush1.msra.mxu0 %v36
    %60 = vmatprep.subr.mxu0 0.0
    %61 = vmatpush1.msra.mxu0 %v37
    %62 = vmatprep.subr.mxu0 0.0
    %63 = vmatpush1.msra.mxu0 0.0
    %64 = vmatprep.subr.mxu0 0.0
    %65 = vmatpush1.msra.mxu0 0.0
    %66 = vmatprep.subr.mxu0 0.0
    %67 = vmatpush1.msra.mxu0 0.0
    %68 = vmatprep.subr.mxu0 0.0
    %69 = vmatpush1.msra.mxu0 0.0
    %70 = vmatprep.subr.mxu0 0.0
    %71 = vmatpush1.msra.mxu0 0.0
    %72 = vmatprep.subr.mxu0 0.0
    %73 = vmatpush1.msra.mxu0 0.0
    %74 = vmatprep.subr.mxu0 0.0
    %75 = vmatpush1.msra.mxu0 0.0
    %76 = vmatprep.subr.mxu0 0.0
    %77 = vmatpush1.msra.mxu0 0.0
    %78 = vmatprep.subr.mxu0 0.0
    %79 = vmatpush1.msra.mxu0 0.0
    %80 = vmatprep.subr.mxu0 0.0
    %81 = vmatpush1.msra.mxu0 0.0
    %82 = vmatprep.subr.mxu0 0.0
    %83 = vmatpush1.msra.mxu0 0.0
    %84 = vmatprep.subr.mxu0 0.0
    %85 = vmatpush1.msra.mxu0 0.0
    %86 = vmatprep.subr.mxu0 0.0
    %87 = vmatpush1.msra.mxu0 0.0
    %88 = vmatprep.subr.mxu0 0.0
    %89 = vmatpush1.msra.mxu0 0.0
    %90 = vmatprep.subr.mxu0 0.0
    %91 = vmatpush1.msra.mxu0 0.0
    %92 = vmatprep.subr.mxu0 0.0
    %93 = vmatpush1.msra.mxu0 0.0
    %94 = vmatprep.subr.mxu0 0.0
    %95 = vmatpush1.msra.mxu0 0.0
    %96 = vmatprep.subr.mxu0 0.0
    %97 = vmatpush1.msra.mxu0 0.0
    %98 = vmatprep.subr.mxu0 0.0
    %99 = vmatpush1.msra.mxu0 0.0
    %100 = vmatprep.subr.mxu0 0.0
    %101 = vmatpush1.msra.mxu0 0.0
    %102 = vmatprep.subr.mxu0 0.0
    %103 = vmatpush1.msra.mxu0 0.0
    %104 = vmatprep.subr.mxu0 0.0
    %105 = vmatpush1.msra.mxu0 0.0
    %106 = vmatprep.subr.mxu0 0.0
    %107 = vmatpush1.msra.mxu0 0.0
    %108 = vmatprep.subr.mxu0 0.0
    %109 = vmatpush1.msra.mxu0 0.0
    %110 = vmatprep.subr.mxu0 0.0
    %111 = vmatpush1.msra.mxu0 0.0
    %112 = vmatprep.subr.mxu0 0.0
    %113 = vmatpush1.msra.mxu0 0.0
    %114 = vmatprep.subr.mxu0 0.0
    %115 = vmatpush1.msra.mxu0 0.0
    %116 = vmatprep.subr.mxu0 0.0
    %117 = vmatpush1.msra.mxu0 0.0
    %118 = vmatprep.mubr.f32.mxu0 0.0
    %119 = vmatmul.mubr.f32.gmra.mrb[0].mxu0 %v40
    %v120 = vpop.f32.mrb[0].mxu0
    %v121 = vadd.f32 0.0, %v120
    %v122 = vpop.f32.mrb[0].mxu0
    %123 = vmatprep.mubr.f32.mxu0 0.0
    %124 = vmatmul.mubr.f32.gmra.mrb[0].mxu0 %v43
    %v125 = vpop.f32.mrb[0].mxu0
    %v126 = vadd.f32 0.0, %v125
    %v127 = vpop.f32.mrb[0].mxu0
    %128 = vmatprep.mubr.f32.mxu0 0.0
    %129 = vmatmul.mubr.f32.gmra.mrb[0].mxu0 %v46
    %v130 = vpop.f32.mrb[0].mxu0
    %v131 = vadd.f32 0.0, %v130
    %v132 = vpop.f32.mrb[0].mxu0
    %133 = vmatprep.mubr.f32.mxu0 0.0
    %134 = vmatmul.mubr.f32.gmra.mrb[0].mxu0 %v49
    %v135 = vpop.f32.mrb[0].mxu0
    %v136 = vadd.f32 0.0, %v135
    %v137 = vpop.f32.mrb[0].mxu0
    %138 = vmatprep.mubr.f32.mxu0 0.0
    %139 = vmatmul.mubr.f32.gmra.mrb[0].mxu0 %v52
    %v140 = vpop.f32.mrb[0].mxu0
    %v141 = vadd.f32 0.0, %v140
    %v142 = vpop.f32.mrb[0].mxu0
    %143 = vdwg.mxu0
    %v144 = vadd.f32 %v24, %v121
    %v145 = vadd.f32 %v25, %v126
    %v146 = vadd.f32 %v26, %v131
    %v147 = vadd.f32 %v27, %v136
    %v148 = vadd.f32 %v28, %v141
    %149 = vst [vmem:[#allocation2] sm:$0xff] %v144
    %150 = vst [vmem:[#allocation2 + $0x8] sm:$0xff] %v145
    %151 = vst [vmem:[#allocation2 + $0x10] sm:$0xff] %v146
    %152 = vst [vmem:[#allocation2 + $0x18] sm:$0xff] %v147
    %153 = vst [vmem:[#allocation2 + $0x20] sm:$0xff] %v148
    // Predicated region
    $region18: #{pallas_linear.1} parent=1 // pred_check
      %p154 = pneg %p15
    $region19: #{pallas_linear.1} parent=1 // pred_check_branch
      %156 = sbr.rel (%p154) target = $region21
    $region20: #{pallas_linear.1} parent=1 // pred_region
      %v157 = vld [vmem:[#allocation2] sm:$0xff]
      %v158 = vld [vmem:[#allocation2 + $0x8] sm:$0xff]
      %v159 = vld [vmem:[#allocation2 + $0x10] sm:$0xff]
      %v160 = vld [vmem:[#allocation2 + $0x18] sm:$0xff]
      %v161 = vld [vmem:[#allocation2 + $0x20] sm:$0xff]
      %v162 = vld [vmem:[%s2] sm:$0x1]
      %v164 = vlaneseq
      %v165 = vshrl.u32 %v164, 7
      %v166 = vsub.s32 0, %v165
      %v167 = vrot.slane %v162, %v166
      %v169 = vadd.f32 %v157, %v167
      %v170 = vadd.f32 %v158, %v167
      %v171 = vadd.f32 %v159, %v167
      %v172 = vadd.f32 %v160, %v167
      %v173 = vadd.f32 %v161, %v167
      %174 = vst [vmem:[#allocation3] sm:$0xff] %v169
      %175 = vst [vmem:[#allocation3 + $0x8] sm:$0xff] %v170
      %176 = vst [vmem:[#allocation3 + $0x10] sm:$0xff] %v171
      %177 = vst [vmem:[#allocation3 + $0x18] sm:$0xff] %v172
      %178 = vst [vmem:[#allocation3 + $0x20] sm:$0xff] %v173
    $region21: #{pallas_linear.1} parent=1 // pred_fallthru
      _
    // Predicated region
    $region22: #{pallas_linear.1} parent=1 // pred_check
      _
    $region23: #{pallas_linear.1} parent=1 // pred_check_branch
      %180 = sbr.rel (0) target = $region25
    $region24: #{pallas_linear.1} parent=1 // pred_region
      %s182 = ssub.s32 640, 640
      %183 = vsyncadd [#allocation4], %s182
      %s184 = sshll.u32 [#allocation3], 4
      %s185 = int_to_ptr.vmem [resolvable:$true] %s184
      %190 = dma.vmem_to_hbm [thread:$0]  %s185, 640, %s3, [#allocation4], 128, 128, 8
    $region25: #{pallas_linear.1} parent=1 // pred_fallthru
      _
    // Predicated region
    $region26: #{pallas_linear.1} parent=1 // pred_check
      _
    $region27: #{pallas_linear.1} parent=1 // pred_check_branch
      %192 = sbr.rel (0) target = $region29
    $region28: #{pallas_linear.1} parent=1 // pred_region
      %193 = dma.done [#allocation4], 640
    $region29: #{pallas_linear.1} parent=1 // pred_fallthru
      _
    %194 = vsyncpa [#allocation4], 1

</llo_original>
